<compile_context>
chip_gen: v5e
topology: v5e:2x2
jax: 0.10.0
libtpu: 0.0.40
codegen_flags: <defaults>
</compile_context>

<pallas_src>
import jax
import jax.numpy as jnp
from jax.experimental import pallas as pl
from jax.experimental.pallas import tpu as pltpu  # noqa: F401  (TPU backend)


# NOTE on activation semantics: the PyTorch module builds `nn.LeakyReLU(True)`.
# The positional `True` lands in `negative_slope` (NOT `inplace`), and PyTorch
# treats it as 1.0 -- i.e. the activation is effectively the identity.  We keep
# that exact behavior to match the reference module bit-for-bit.
_NEG_SLOPE = 1.0


def _leaky_relu(x):
    return jnp.where(x >= 0, x, _NEG_SLOPE * x)


def _sigmoid(x):
    return 1.0 / (1.0 + jnp.exp(-x))


def _mad_gan_kernel(g_ref,
                    gw1_ref, gb1_ref, gw2_ref, gb2_ref, gw3_ref, gb3_ref,
                    dw1_ref, db1_ref, dw2_ref, db2_ref, dw3_ref, db3_ref,
                    z_ref, real_ref, fake_ref):
    """Fused MAD_GAN forward: generator + discriminator(real) + discriminator(fake)."""
    g = g_ref[...]                                            # (B, n)

    def dot(a, w_ref):
        return jnp.dot(a, w_ref[...], preferred_element_type=jnp.float32)

    # ---- generator: n -> h -> h -> n, Sigmoid --------------------------------
    h = _leaky_relu(dot(g, gw1_ref) + gb1_ref[...])
    h = _leaky_relu(dot(h, gw2_ref) + gb2_ref[...])
    z = _sigmoid(dot(h, gw3_ref) + gb3_ref[...])              # (B, n)
    z_ref[...] = z

    # ---- discriminator: n -> h -> h -> 1, Sigmoid -----------------------------
    # Final layer weight dw3 is kept in its PyTorch (1, h) layout: the (B, h)
    # activation is reduced along lanes (broadcast-mul + sum) instead of an
    # N=1 matmul.
    def discriminate(x):
        d = _leaky_relu(dot(x, dw1_ref) + db1_ref[...])
        d = _leaky_relu(dot(d, dw2_ref) + db2_ref[...])
        logit = jnp.sum(d * dw3_ref[...], axis=1, keepdims=True) + db3_ref[...]
        return _sigmoid(logit)                                # (B, 1)

    real_ref[...] = discriminate(g)
    fake_ref[...] = discriminate(z)


def prepare_params(gen_layers, disc_layers):
    """One-time parameter-setup transpose: PyTorch (out, in) -> kernel (in, out).

    The final discriminator layer is kept as a (1, hidden) row vector.
    """
    (gw1, gb1), (gw2, gb2), (gw3, gb3) = gen_layers
    (dw1, db1), (dw2, db2), (dw3, db3) = disc_layers
    return (
        gw1.T, gb1.reshape(1, -1),
        gw2.T, gb2.reshape(1, -1),
        gw3.T, gb3.reshape(1, -1),
        dw1.T, db1.reshape(1, -1),
        dw2.T, db2.reshape(1, -1),
        dw3,   db3.reshape(1, -1),
    )


def mad_gan_forward(g, params, *, feats, n_window):
    """Pallas equivalent of MAD_GAN.forward.

    g:      (B, n_window, feats) float32
    params: output of prepare_params (weights already in (in, out) layout)
    returns (z, real_score, fake_score) with shapes
            (B, n_window, feats), (B, 1), (B, 1)
    """
    B = g.shape[0]
    n = feats * n_window
    g_flat = g.reshape(B, n)                                  # glue: flatten

    z_flat, real, fake = pl.pallas_call(
        _mad_gan_kernel,
        out_shape=(
            jax.ShapeDtypeStruct((B, n), jnp.float32),
            jax.ShapeDtypeStruct((B, 1), jnp.float32),
            jax.ShapeDtypeStruct((B, 1), jnp.float32),
        ),
        # Gridless: every operand/result is a whole-array VMEM block.
    )(g_flat, *params)

    return z_flat.reshape(B, n_window, feats), real, fake     # glue: view


if __name__ == "__main__":
    feats, n_window, hidden, batch = 16, 5, 16, 8
    n = feats * n_window

    key = jax.random.PRNGKey(0)
    keys = iter(jax.random.split(key, 13))

    def linear_init(kw, kb, fan_in, fan_out):
        # PyTorch nn.Linear default init (uniform +/- 1/sqrt(fan_in)),
        # weight in PyTorch (out, in) layout.
        bound = 1.0 / (fan_in ** 0.5)
        w = jax.random.uniform(kw, (fan_out, fan_in), jnp.float32, -bound, bound)
        b = jax.random.uniform(kb, (fan_out,), jnp.float32, -bound, bound)
        return w, b

    g = jax.random.normal(next(keys), (batch, n_window, feats), dtype=jnp.float32)

    gen_layers = [
        linear_init(next(keys), next(keys), n, hidden),
        linear_init(next(keys), next(keys), hidden, hidden),
        linear_init(next(keys), next(keys), hidden, n),
    ]
    disc_layers = [
        linear_init(next(keys), next(keys), n, hidden),
        linear_init(next(keys), next(keys), hidden, hidden),
        linear_init(next(keys), next(keys), hidden, 1),
    ]

    params = prepare_params(gen_layers, disc_layers)          # one-time setup

    z, real, fake = mad_gan_forward(g, params, feats=feats, n_window=n_window)
    jax.block_until_ready((z, real, fake))

    # ---- pure-JAX reference ---------------------------------------------------
    def leaky(x):
        return jnp.where(x >= 0, x, _NEG_SLOPE * x)

    def sig(x):
        return 1.0 / (1.0 + jnp.exp(-x))

    def mlp(x, layers):
        (w1, b1), (w2, b2), (w3, b3) = layers
        h = leaky(x @ w1.T + b1)
        h = leaky(h @ w2.T + b2)
        return sig(h @ w3.T + b3)

    g_flat = g.reshape(batch, n)
    z_ref = mlp(g_flat, gen_layers)
    real_ref = mlp(g_flat, disc_layers)
    fake_ref = mlp(z_ref, disc_layers)

    assert jnp.allclose(z, z_ref.reshape(batch, n_window, feats), atol=1e-3, rtol=1e-3)
    assert jnp.allclose(real, real_ref, atol=1e-3, rtol=1e-3)
    assert jnp.allclose(fake, fake_ref, atol=1e-3, rtol=1e-3)

    print("KERNEL_OK")
</pallas_src>

<mosaic_0001>
module attributes {stable_mosaic.version = 11 : i64} {
  func.func @_mad_gan_kernel(%arg0: memref<8x80xf32, #tpu.memory_space<vmem>>, %arg1: memref<80x16xf32, #tpu.memory_space<vmem>>, %arg2: memref<1x16xf32, #tpu.memory_space<vmem>>, %arg3: memref<16x16xf32, #tpu.memory_space<vmem>>, %arg4: memref<1x16xf32, #tpu.memory_space<vmem>>, %arg5: memref<16x80xf32, #tpu.memory_space<vmem>>, %arg6: memref<1x80xf32, #tpu.memory_space<vmem>>, %arg7: memref<80x16xf32, #tpu.memory_space<vmem>>, %arg8: memref<1x16xf32, #tpu.memory_space<vmem>>, %arg9: memref<16x16xf32, #tpu.memory_space<vmem>>, %arg10: memref<1x16xf32, #tpu.memory_space<vmem>>, %arg11: memref<1x16xf32, #tpu.memory_space<vmem>>, %arg12: memref<1x1xf32, #tpu.memory_space<vmem>>, %arg13: memref<8x80xf32, #tpu.memory_space<vmem>>, %arg14: memref<8x1xf32, #tpu.memory_space<vmem>>, %arg15: memref<8x1xf32, #tpu.memory_space<vmem>>) attributes {dimension_semantics = [], scalar_prefetch = 0 : i64, scratch_operands = 0 : i64, tpu.core_type = #tpu.core_type<tc>} {
    %c0 = arith.constant 0 : index
    %c0_0 = arith.constant 0 : index
    %0 = vector.load %arg0[%c0, %c0_0] : memref<8x80xf32, #tpu.memory_space<vmem>>, vector<8x80xf32>
    %c0_1 = arith.constant 0 : index
    %c0_2 = arith.constant 0 : index
    %1 = vector.load %arg1[%c0_1, %c0_2] : memref<80x16xf32, #tpu.memory_space<vmem>>, vector<80x16xf32>
    %cst = arith.constant dense<0.000000e+00> : vector<8x16xf32>
    %2 = tpu.matmul %0, %1, %cst {dimension_numbers = #tpu.dot_dimension_numbers<[1], [0], [0], [1], [0, 0, 1, 1], [], []>} : vector<8x80xf32>, vector<80x16xf32>, vector<8x16xf32> -> vector<8x16xf32>
    %c0_3 = arith.constant 0 : index
    %c0_4 = arith.constant 0 : index
    %3 = vector.load %arg2[%c0_3, %c0_4] : memref<1x16xf32, #tpu.memory_space<vmem>>, vector<1x16xf32>
    %4 = vector.broadcast %3 : vector<1x16xf32> to vector<8x16xf32>
    %5 = arith.addf %2, %4 : vector<8x16xf32>
    %cst_5 = arith.constant 0.000000e+00 : f32
    %6 = vector.broadcast %cst_5 : f32 to vector<8x16xf32>
    %7 = arith.cmpf oge, %5, %6 : vector<8x16xf32>
    %cst_6 = arith.constant 1.000000e+00 : f32
    %8 = vector.broadcast %cst_6 : f32 to vector<8x16xf32>
    %9 = arith.mulf %8, %5 : vector<8x16xf32>
    %10 = arith.select %7, %5, %9 : vector<8x16xi1>, vector<8x16xf32>
    %c0_7 = arith.constant 0 : index
    %c0_8 = arith.constant 0 : index
    %11 = vector.load %arg3[%c0_7, %c0_8] : memref<16x16xf32, #tpu.memory_space<vmem>>, vector<16x16xf32>
    %cst_9 = arith.constant dense<0.000000e+00> : vector<8x16xf32>
    %12 = tpu.matmul %10, %11, %cst_9 {dimension_numbers = #tpu.dot_dimension_numbers<[1], [0], [0], [1], [0, 0, 1, 1], [], []>} : vector<8x16xf32>, vector<16x16xf32>, vector<8x16xf32> -> vector<8x16xf32>
    %c0_10 = arith.constant 0 : index
    %c0_11 = arith.constant 0 : index
    %13 = vector.load %arg4[%c0_10, %c0_11] : memref<1x16xf32, #tpu.memory_space<vmem>>, vector<1x16xf32>
    %14 = vector.broadcast %13 : vector<1x16xf32> to vector<8x16xf32>
    %15 = arith.addf %12, %14 : vector<8x16xf32>
    %cst_12 = arith.constant 0.000000e+00 : f32
    %16 = vector.broadcast %cst_12 : f32 to vector<8x16xf32>
    %17 = arith.cmpf oge, %15, %16 : vector<8x16xf32>
    %cst_13 = arith.constant 1.000000e+00 : f32
    %18 = vector.broadcast %cst_13 : f32 to vector<8x16xf32>
    %19 = arith.mulf %18, %15 : vector<8x16xf32>
    %20 = arith.select %17, %15, %19 : vector<8x16xi1>, vector<8x16xf32>
    %c0_14 = arith.constant 0 : index
    %c0_15 = arith.constant 0 : index
    %21 = vector.load %arg5[%c0_14, %c0_15] : memref<16x80xf32, #tpu.memory_space<vmem>>, vector<16x80xf32>
    %cst_16 = arith.constant dense<0.000000e+00> : vector<8x80xf32>
    %22 = tpu.matmul %20, %21, %cst_16 {dimension_numbers = #tpu.dot_dimension_numbers<[1], [0], [0], [1], [0, 0, 1, 1], [], []>} : vector<8x16xf32>, vector<16x80xf32>, vector<8x80xf32> -> vector<8x80xf32>
    %c0_17 = arith.constant 0 : index
    %c0_18 = arith.constant 0 : index
    %23 = vector.load %arg6[%c0_17, %c0_18] : memref<1x80xf32, #tpu.memory_space<vmem>>, vector<1x80xf32>
    %24 = vector.broadcast %23 : vector<1x80xf32> to vector<8x80xf32>
    %25 = arith.addf %22, %24 : vector<8x80xf32>
    %cst_19 = arith.constant 0.000000e+00 : f32
    %26 = vector.broadcast %cst_19 : f32 to vector<8x80xf32>
    %27 = arith.subf %26, %25 : vector<8x80xf32>
    %28 = math.exp %27 : vector<8x80xf32>
    %cst_20 = arith.constant 1.000000e+00 : f32
    %29 = vector.broadcast %cst_20 : f32 to vector<8x80xf32>
    %30 = arith.addf %29, %28 : vector<8x80xf32>
    %cst_21 = arith.constant 1.000000e+00 : f32
    %31 = vector.broadcast %cst_21 : f32 to vector<8x80xf32>
    %32 = arith.divf %31, %30 : vector<8x80xf32>
    %c0_22 = arith.constant 0 : index
    %c0_23 = arith.constant 0 : index
    %33 = vector.load %arg13[%c0_22, %c0_23] : memref<8x80xf32, #tpu.memory_space<vmem>>, vector<8x80xf32>
    tpu.vector_store %arg13[%c0_22, %c0_23], %32 {strides = array<i32>} : memref<8x80xf32, #tpu.memory_space<vmem>>, vector<8x80xf32>,
    %c0_24 = arith.constant 0 : index
    %c0_25 = arith.constant 0 : index
    %34 = vector.load %arg7[%c0_24, %c0_25] : memref<80x16xf32, #tpu.memory_space<vmem>>, vector<80x16xf32>
    %cst_26 = arith.constant dense<0.000000e+00> : vector<8x16xf32>
    %35 = tpu.matmul %0, %34, %cst_26 {dimension_numbers = #tpu.dot_dimension_numbers<[1], [0], [0], [1], [0, 0, 1, 1], [], []>} : vector<8x80xf32>, vector<80x16xf32>, vector<8x16xf32> -> vector<8x16xf32>
    %c0_27 = arith.constant 0 : index
    %c0_28 = arith.constant 0 : index
    %36 = vector.load %arg8[%c0_27, %c0_28] : memref<1x16xf32, #tpu.memory_space<vmem>>, vector<1x16xf32>
    %37 = vector.broadcast %36 : vector<1x16xf32> to vector<8x16xf32>
    %38 = arith.addf %35, %37 : vector<8x16xf32>
    %cst_29 = arith.constant 0.000000e+00 : f32
    %39 = vector.broadcast %cst_29 : f32 to vector<8x16xf32>
    %40 = arith.cmpf oge, %38, %39 : vector<8x16xf32>
    %cst_30 = arith.constant 1.000000e+00 : f32
    %41 = vector.broadcast %cst_30 : f32 to vector<8x16xf32>
    %42 = arith.mulf %41, %38 : vector<8x16xf32>
    %43 = arith.select %40, %38, %42 : vector<8x16xi1>, vector<8x16xf32>
    %c0_31 = arith.constant 0 : index
    %c0_32 = arith.constant 0 : index
    %44 = vector.load %arg9[%c0_31, %c0_32] : memref<16x16xf32, #tpu.memory_space<vmem>>, vector<16x16xf32>
    %cst_33 = arith.constant dense<0.000000e+00> : vector<8x16xf32>
    %45 = tpu.matmul %43, %44, %cst_33 {dimension_numbers = #tpu.dot_dimension_numbers<[1], [0], [0], [1], [0, 0, 1, 1], [], []>} : vector<8x16xf32>, vector<16x16xf32>, vector<8x16xf32> -> vector<8x16xf32>
    %c0_34 = arith.constant 0 : index
    %c0_35 = arith.constant 0 : index
    %46 = vector.load %arg10[%c0_34, %c0_35] : memref<1x16xf32, #tpu.memory_space<vmem>>, vector<1x16xf32>
    %47 = vector.broadcast %46 : vector<1x16xf32> to vector<8x16xf32>
    %48 = arith.addf %45, %47 : vector<8x16xf32>
    %cst_36 = arith.constant 0.000000e+00 : f32
    %49 = vector.broadcast %cst_36 : f32 to vector<8x16xf32>
    %50 = arith.cmpf oge, %48, %49 : vector<8x16xf32>
    %cst_37 = arith.constant 1.000000e+00 : f32
    %51 = vector.broadcast %cst_37 : f32 to vector<8x16xf32>
    %52 = arith.mulf %51, %48 : vector<8x16xf32>
    %53 = arith.select %50, %48, %52 : vector<8x16xi1>, vector<8x16xf32>
    %c0_38 = arith.constant 0 : index
    %c0_39 = arith.constant 0 : index
    %54 = vector.load %arg11[%c0_38, %c0_39] : memref<1x16xf32, #tpu.memory_space<vmem>>, vector<1x16xf32>
    %55 = vector.broadcast %54 : vector<1x16xf32> to vector<8x16xf32>
    %56 = arith.mulf %53, %55 : vector<8x16xf32>
    %cst_40 = arith.constant dense<0.000000e+00> : vector<8xf32>
    %57 = vector.multi_reduction <add>, %56, %cst_40 [1] : vector<8x16xf32> to vector<8xf32>
    %58 = vector.shape_cast %57 : vector<8xf32> to vector<8x1xf32>
    %c0_41 = arith.constant 0 : index
    %c0_42 = arith.constant 0 : index
    %59 = vector.load %arg12[%c0_41, %c0_42] : memref<1x1xf32, #tpu.memory_space<vmem>>, vector<1x1xf32>
    %60 = vector.broadcast %59 : vector<1x1xf32> to vector<8x1xf32>
    %61 = arith.addf %58, %60 : vector<8x1xf32>
    %cst_43 = arith.constant 0.000000e+00 : f32
    %62 = vector.broadcast %cst_43 : f32 to vector<8x1xf32>
    %63 = arith.subf %62, %61 : vector<8x1xf32>
    %64 = math.exp %63 : vector<8x1xf32>
    %cst_44 = arith.constant 1.000000e+00 : f32
    %65 = vector.broadcast %cst_44 : f32 to vector<8x1xf32>
    %66 = arith.addf %65, %64 : vector<8x1xf32>
    %cst_45 = arith.constant 1.000000e+00 : f32
    %67 = vector.broadcast %cst_45 : f32 to vector<8x1xf32>
    %68 = arith.divf %67, %66 : vector<8x1xf32>
    %c0_46 = arith.constant 0 : index
    %c0_47 = arith.constant 0 : index
    %69 = vector.load %arg14[%c0_46, %c0_47] : memref<8x1xf32, #tpu.memory_space<vmem>>, vector<8x1xf32>
    tpu.vector_store %arg14[%c0_46, %c0_47], %68 {strides = array<i32>} : memref<8x1xf32, #tpu.memory_space<vmem>>, vector<8x1xf32>,
    %c0_48 = arith.constant 0 : index
    %c0_49 = arith.constant 0 : index
    %70 = vector.load %arg7[%c0_48, %c0_49] : memref<80x16xf32, #tpu.memory_space<vmem>>, vector<80x16xf32>
    %cst_50 = arith.constant dense<0.000000e+00> : vector<8x16xf32>
    %71 = tpu.matmul %32, %70, %cst_50 {dimension_numbers = #tpu.dot_dimension_numbers<[1], [0], [0], [1], [0, 0, 1, 1], [], []>} : vector<8x80xf32>, vector<80x16xf32>, vector<8x16xf32> -> vector<8x16xf32>
    %c0_51 = arith.constant 0 : index
    %c0_52 = arith.constant 0 : index
    %72 = vector.load %arg8[%c0_51, %c0_52] : memref<1x16xf32, #tpu.memory_space<vmem>>, vector<1x16xf32>
    %73 = vector.broadcast %72 : vector<1x16xf32> to vector<8x16xf32>
    %74 = arith.addf %71, %73 : vector<8x16xf32>
    %cst_53 = arith.constant 0.000000e+00 : f32
    %75 = vector.broadcast %cst_53 : f32 to vector<8x16xf32>
    %76 = arith.cmpf oge, %74, %75 : vector<8x16xf32>
    %cst_54 = arith.constant 1.000000e+00 : f32
    %77 = vector.broadcast %cst_54 : f32 to vector<8x16xf32>
    %78 = arith.mulf %77, %74 : vector<8x16xf32>
    %79 = arith.select %76, %74, %78 : vector<8x16xi1>, vector<8x16xf32>
    %c0_55 = arith.constant 0 : index
    %c0_56 = arith.constant 0 : index
    %80 = vector.load %arg9[%c0_55, %c0_56] : memref<16x16xf32, #tpu.memory_space<vmem>>, vector<16x16xf32>
    %cst_57 = arith.constant dense<0.000000e+00> : vector<8x16xf32>
    %81 = tpu.matmul %79, %80, %cst_57 {dimension_numbers = #tpu.dot_dimension_numbers<[1], [0], [0], [1], [0, 0, 1, 1], [], []>} : vector<8x16xf32>, vector<16x16xf32>, vector<8x16xf32> -> vector<8x16xf32>
    %c0_58 = arith.constant 0 : index
    %c0_59 = arith.constant 0 : index
    %82 = vector.load %arg10[%c0_58, %c0_59] : memref<1x16xf32, #tpu.memory_space<vmem>>, vector<1x16xf32>
    %83 = vector.broadcast %82 : vector<1x16xf32> to vector<8x16xf32>
    %84 = arith.addf %81, %83 : vector<8x16xf32>
    %cst_60 = arith.constant 0.000000e+00 : f32
    %85 = vector.broadcast %cst_60 : f32 to vector<8x16xf32>
    %86 = arith.cmpf oge, %84, %85 : vector<8x16xf32>
    %cst_61 = arith.constant 1.000000e+00 : f32
    %87 = vector.broadcast %cst_61 : f32 to vector<8x16xf32>
    %88 = arith.mulf %87, %84 : vector<8x16xf32>
    %89 = arith.select %86, %84, %88 : vector<8x16xi1>, vector<8x16xf32>
    %c0_62 = arith.constant 0 : index
    %c0_63 = arith.constant 0 : index
    %90 = vector.load %arg11[%c0_62, %c0_63] : memref<1x16xf32, #tpu.memory_space<vmem>>, vector<1x16xf32>
    %91 = vector.broadcast %90 : vector<1x16xf32> to vector<8x16xf32>
    %92 = arith.mulf %89, %91 : vector<8x16xf32>
    %cst_64 = arith.constant dense<0.000000e+00> : vector<8xf32>
    %93 = vector.multi_reduction <add>, %92, %cst_64 [1] : vector<8x16xf32> to vector<8xf32>
    %94 = vector.shape_cast %93 : vector<8xf32> to vector<8x1xf32>
    %c0_65 = arith.constant 0 : index
    %c0_66 = arith.constant 0 : index
    %95 = vector.load %arg12[%c0_65, %c0_66] : memref<1x1xf32, #tpu.memory_space<vmem>>, vector<1x1xf32>
    %96 = vector.broadcast %95 : vector<1x1xf32> to vector<8x1xf32>
    %97 = arith.addf %94, %96 : vector<8x1xf32>
    %cst_67 = arith.constant 0.000000e+00 : f32
    %98 = vector.broadcast %cst_67 : f32 to vector<8x1xf32>
    %99 = arith.subf %98, %97 : vector<8x1xf32>
    %100 = math.exp %99 : vector<8x1xf32>
    %cst_68 = arith.constant 1.000000e+00 : f32
    %101 = vector.broadcast %cst_68 : f32 to vector<8x1xf32>
    %102 = arith.addf %101, %100 : vector<8x1xf32>
    %cst_69 = arith.constant 1.000000e+00 : f32
    %103 = vector.broadcast %cst_69 : f32 to vector<8x1xf32>
    %104 = arith.divf %103, %102 : vector<8x1xf32>
    %c0_70 = arith.constant 0 : index
    %c0_71 = arith.constant 0 : index
    %105 = vector.load %arg15[%c0_70, %c0_71] : memref<8x1xf32, #tpu.memory_space<vmem>>, vector<8x1xf32>
    tpu.vector_store %arg15[%c0_70, %c0_71], %104 {strides = array<i32>} : memref<8x1xf32, #tpu.memory_space<vmem>>, vector<8x1xf32>,
    return
  }
}

</mosaic_0001>

<llo_original>
// kernel: tpu_custom_call.1
$region0: #{tpu_custom_call.1}
  #allocation0 [shape = 'u32[]', space=smem, size = 0x4, offset = 0x4, fixed_abs, tag = 'smem constant byte address 0x4 - core index']
  #allocation1 [shape = 'u32[72,128]{1,0:T(1,128)}', space=vmem, size = 0x9000, scoped, tag = 'internal scratch']
  #allocation2 [shape = 'f32[1,1]{1,0:T(1,128)S(1)}', space=vmem, size = 0x200, scoped, tag = 'scoped memory for tpu_custom_call.1']
  %s0 = inlined_call_operand.vmem [shape: f32[8,80], index: 0, kind: input, shape index: {}]
  %s1 = inlined_call_operand.vmem [shape: f32[80,16], index: 1, kind: input, shape index: {}]
  %s2 = inlined_call_operand.vmem [shape: f32[1,16], index: 2, kind: input, shape index: {}]
  %s3 = inlined_call_operand.vmem [shape: f32[16,16], index: 3, kind: input, shape index: {}]
  %s4 = inlined_call_operand.vmem [shape: f32[1,16], index: 4, kind: input, shape index: {}]
  %s5 = inlined_call_operand.vmem [shape: f32[16,80], index: 5, kind: input, shape index: {}]
  %s6 = inlined_call_operand.vmem [shape: f32[1,80], index: 6, kind: input, shape index: {}]
  %s7 = inlined_call_operand.vmem [shape: f32[80,16], index: 7, kind: input, shape index: {}]
  %s8 = inlined_call_operand.vmem [shape: f32[1,16], index: 8, kind: input, shape index: {}]
  %s9 = inlined_call_operand.vmem [shape: f32[16,16], index: 9, kind: input, shape index: {}]
  %s10 = inlined_call_operand.vmem [shape: f32[1,16], index: 10, kind: input, shape index: {}]
  %s11 = inlined_call_operand.vmem [shape: f32[1,16], index: 11, kind: input, shape index: {}]
  %s12 = inlined_call_operand.<no memory space> [shape: f32[1,1], index: 12, kind: input, shape index: {}]
  %s13 = inlined_call_operand.hbm [shape: f32[8,80], index: 13, kind: output, shape index: {0}]
  %s14 = inlined_call_operand.vmem [shape: f32[8,1], index: 14, kind: output, shape index: {1}]
  %s15 = inlined_call_operand.vmem [shape: f32[8,1], index: 15, kind: output, shape index: {2}]
  %16 = xla_tuple %s13, %s14, %s15
  %s17 = sld [smem:[#allocation0]]
  $region78: #{tpu_custom_call.1} parent=0
    _
  %s19 = ssub.s32 1, %s17
  %s20 = scalar_select 0, %s19, %s17
  %v21 = vstv %s12
  %22 = vst [vmem:[#allocation2] sm:$0x1] %v21
  $region1: #{tpu_custom_call.1} parent=0
    #allocation3 [shape = 'u8[4096]{0}', space=vmem, size = 0x1000, scoped, tag = 'output window, operand 0, single buffered']
    #allocation4 [shape = 's32[1]{0}', space=sflag, size = 0x4, scoped, tag = 'scoped memory for tpu_custom_call.1']
    %23 = vsyncpa [#allocation4], 0
    // Predicated region
    $region2: #{tpu_custom_call.1} parent=1 // pred_check
      _
    $region3: #{tpu_custom_call.1} parent=1 // pred_check_branch
      %25 = sbr.rel (0) target = $region5
    $region4: #{tpu_custom_call.1} parent=1 // pred_region
      _
    $region5: #{tpu_custom_call.1} parent=1 // pred_fallthru
      _
    // Predicated region
    $region6: #{tpu_custom_call.1} parent=1 // pred_check
      _
    $region7: #{tpu_custom_call.1} parent=1 // pred_check_branch
      %27 = sbr.rel (0) target = $region9
    $region8: #{tpu_custom_call.1} parent=1 // pred_region
      _
    $region9: #{tpu_custom_call.1} parent=1 // pred_fallthru
      _
    // Predicated region
    $region10: #{tpu_custom_call.1} parent=1 // pred_check
      _
    $region11: #{tpu_custom_call.1} parent=1 // pred_check_branch
      %29 = sbr.rel (0) target = $region13
    $region12: #{tpu_custom_call.1} parent=1 // pred_region
      _
    $region13: #{tpu_custom_call.1} parent=1 // pred_fallthru
      _
    // Predicated region
    $region14: #{tpu_custom_call.1} parent=1 // pred_check
      _
    $region15: #{tpu_custom_call.1} parent=1 // pred_check_branch
      %31 = sbr.rel (0) target = $region17
    $region16: #{tpu_custom_call.1} parent=1 // pred_region
      _
    $region17: #{tpu_custom_call.1} parent=1 // pred_fallthru
      _
    // Predicated region
    $region18: #{tpu_custom_call.1} parent=1 // pred_check
      _
    $region19: #{tpu_custom_call.1} parent=1 // pred_check_branch
      %33 = sbr.rel (0) target = $region21
    $region20: #{tpu_custom_call.1} parent=1 // pred_region
      _
    $region21: #{tpu_custom_call.1} parent=1 // pred_fallthru
      _
    // Predicated region
    $region22: #{tpu_custom_call.1} parent=1 // pred_check
      _
    $region23: #{tpu_custom_call.1} parent=1 // pred_check_branch
      %35 = sbr.rel (0) target = $region25
    $region24: #{tpu_custom_call.1} parent=1 // pred_region
      _
    $region25: #{tpu_custom_call.1} parent=1 // pred_fallthru
      _
    // Predicated region
    $region26: #{tpu_custom_call.1} parent=1 // pred_check
      _
    $region27: #{tpu_custom_call.1} parent=1 // pred_check_branch
      %37 = sbr.rel (0) target = $region29
    $region28: #{tpu_custom_call.1} parent=1 // pred_region
      _
    $region29: #{tpu_custom_call.1} parent=1 // pred_fallthru
      _
    // Predicated region
    $region30: #{tpu_custom_call.1} parent=1 // pred_check
      _
    $region31: #{tpu_custom_call.1} parent=1 // pred_check_branch
      %39 = sbr.rel (0) target = $region33
    $region32: #{tpu_custom_call.1} parent=1 // pred_region
      _
    $region33: #{tpu_custom_call.1} parent=1 // pred_fallthru
      _
    // Predicated region
    $region34: #{tpu_custom_call.1} parent=1 // pred_check
      _
    $region35: #{tpu_custom_call.1} parent=1 // pred_check_branch
      %41 = sbr.rel (0) target = $region37
    $region36: #{tpu_custom_call.1} parent=1 // pred_region
      _
    $region37: #{tpu_custom_call.1} parent=1 // pred_fallthru
      _
    // Predicated region
    $region38: #{tpu_custom_call.1} parent=1 // pred_check
      _
    $region39: #{tpu_custom_call.1} parent=1 // pred_check_branch
      %43 = sbr.rel (0) target = $region41
    $region40: #{tpu_custom_call.1} parent=1 // pred_region
      _
    $region41: #{tpu_custom_call.1} parent=1 // pred_fallthru
      _
    // Predicated region
    $region42: #{tpu_custom_call.1} parent=1 // pred_check
      _
    $region43: #{tpu_custom_call.1} parent=1 // pred_check_branch
      %45 = sbr.rel (0) target = $region45
    $region44: #{tpu_custom_call.1} parent=1 // pred_region
      _
    $region45: #{tpu_custom_call.1} parent=1 // pred_fallthru
      _
    // Predicated region
    $region46: #{tpu_custom_call.1} parent=1 // pred_check
      _
    $region47: #{tpu_custom_call.1} parent=1 // pred_check_branch
      %47 = sbr.rel (0) target = $region49
    $region48: #{tpu_custom_call.1} parent=1 // pred_region
      _
    $region49: #{tpu_custom_call.1} parent=1 // pred_fallthru
      _
    // Predicated region
    $region50: #{tpu_custom_call.1} parent=1 // pred_check
      _
    $region51: #{tpu_custom_call.1} parent=1 // pred_check_branch
      %49 = sbr.rel (0) target = $region53
    $region52: #{tpu_custom_call.1} parent=1 // pred_region
      _
    $region53: #{tpu_custom_call.1} parent=1 // pred_fallthru
      _
    %v50 = vld [vmem:[%s0] sm:$0xff]
    %v51 = vld [vmem:[%s1] sm:$0xff]
    %v52 = vld [vmem:[%s1 + $0x8] sm:$0xff]
    %v53 = vld [vmem:[%s1 + $0x10] sm:$0xff]
    %v54 = vld [vmem:[%s1 + $0x18] sm:$0xff]
    %v55 = vld [vmem:[%s1 + $0x20] sm:$0xff]
    %v56 = vld [vmem:[%s1 + $0x28] sm:$0xff]
    %v57 = vld [vmem:[%s1 + $0x30] sm:$0xff]
    %v58 = vld [vmem:[%s1 + $0x38] sm:$0xff]
    %v59 = vld [vmem:[%s1 + $0x40] sm:$0xff]
    %v60 = vld [vmem:[%s1 + $0x48] sm:$0xff]
    %v61 = vld [vmem:[%s2] sm:$0x1]
    %v63 = vperm.slane %v61, 0
    %vm65 = vcmask 654336
    %v67 = vsel %vm65, %v50, 0
    %69 = vmatpush.msra.mxu0 0.0
    %70 = vmatpush.msra.mxu0 0.0
    %71 = vmatpush.msra.mxu0 0.0
    %72 = vmatpush.msra.mxu0 0.0
    %73 = vmatpush.msra.mxu0 0.0
    %74 = vmatpush.msra.mxu0 0.0
    %75 = vmatpush.msra.mxu0 %v60
    %76 = vmatpush.msra.mxu0 %v59
    %77 = vmatpush.msra.mxu0 %v58
    %78 = vmatpush.msra.mxu0 %v57
    %79 = vmatpush.msra.mxu0 %v56
    %80 = vmatpush.msra.mxu0 %v55
    %81 = vmatpush.msra.mxu0 %v54
    %82 = vmatpush.msra.mxu0 %v53
    %83 = vmatpush.msra.mxu0 %v52
    %84 = vmatpush.msra.mxu0 %v51
    %85 = vmatmul.f32.gmra.mxu0 %v67
    %v86 = vpop.f32.mrf.mxu0
    %v87 = vadd.f32 %v63, %v86
    %88 = vdwg.mxu0
    %v89 = vld [vmem:[%s3] sm:$0xff]
    %v90 = vld [vmem:[%s3 + $0x8] sm:$0xff]
    %v91 = vld [vmem:[%s4] sm:$0x1]
    %v93 = vperm.slane %v91, 0
    %vm95 = vcmask 130048
    %v97 = vsel %vm95, %v87, 0
    %99 = vmatpush.msra.mxu0 0.0
    %100 = vmatpush.msra.mxu0 0.0
    %101 = vmatpush.msra.mxu0 0.0
    %102 = vmatpush.msra.mxu0 0.0
    %103 = vmatpush.msra.mxu0 0.0
    %104 = vmatpush.msra.mxu0 0.0
    %105 = vmatpush.msra.mxu0 0.0
    %106 = vmatpush.msra.mxu0 0.0
    %107 = vmatpush.msra.mxu0 0.0
    %108 = vmatpush.msra.mxu0 0.0
    %109 = vmatpush.msra.mxu0 0.0
    %110 = vmatpush.msra.mxu0 0.0
    %111 = vmatpush.msra.mxu0 0.0
    %112 = vmatpush.msra.mxu0 0.0
    %113 = vmatpush.msra.mxu0 %v90
    %114 = vmatpush.msra.mxu0 %v89
    %115 = vmatmul.f32.gmra.mxu0 %v97
    %v116 = vpop.f32.mrf.mxu0
    %v117 = vadd.f32 %v93, %v116
    %118 = vdwg.mxu0
    %v119 = vld [vmem:[%s5] sm:$0xff]
    %v120 = vld [vmem:[%s5 + $0x8] sm:$0xff]
    %v121 = vld [vmem:[%s6] sm:$0x1]
    %v123 = vperm.slane %v121, 0
    %v126 = vsel %vm95, %v117, 0
    %128 = vmatpush.msra.mxu0 0.0
    %129 = vmatpush.msra.mxu0 0.0
    %130 = vmatpush.msra.mxu0 0.0
    %131 = vmatpush.msra.mxu0 0.0
    %132 = vmatpush.msra.mxu0 0.0
    %133 = vmatpush.msra.mxu0 0.0
    %134 = vmatpush.msra.mxu0 0.0
    %135 = vmatpush.msra.mxu0 0.0
    %136 = vmatpush.msra.mxu0 0.0
    %137 = vmatpush.msra.mxu0 0.0
    %138 = vmatpush.msra.mxu0 0.0
    %139 = vmatpush.msra.mxu0 0.0
    %140 = vmatpush.msra.mxu0 0.0
    %141 = vmatpush.msra.mxu0 0.0
    %142 = vmatpush.msra.mxu0 %v120
    %143 = vmatpush.msra.mxu0 %v119
    %144 = vmatmul.f32.gmra.mxu0 %v126
    %v145 = vpop.f32.mrf.mxu0
    %v146 = vadd.f32 %v123, %v145
    %147 = vdwg.mxu0
    %v148 = vsub.f32 0.0, %v146
    %v149 = vmul.f32 %v148, 1.442695
    %v150 = vpow.pop %v149
    %v151 = vadd.f32 %v150, 1.0
    %v152 = vrcp.pop %v151
    %v153 = vmul.f32 %v151, %v152
    %v154 = vsub.f32 1.0, %v153
    %v155 = vmul.f32 %v152, %v154
    %v156 = vadd.f32 %v152, %v155
    %vm157 = vweird.f32 %v151
    %vm158 = vweird.f32 %v152
    %vm159 = vmor %vm157, %vm158
    %v160 = vsel %vm159, %v152, %v156
    %v161 = vand.u32 2147483647, %v151
    %vm162 = vcmp.eq.f32.partialorder %v161, 8.507059e+37
    %v163 = vand.u32 %v151, 2147483648
    %v164 = vor.u32 1.1754944e-38, %v163
    %v165 = vsel %vm162, %v164, %v160
    %v166 = vmul.f32 1.0, %v165
    %167 = vst.msk [vmem:[#allocation3] sm:$0xff] %vm65, %v166
    %v168 = vld [vmem:[%s7] sm:$0xff]
    %v169 = vld [vmem:[%s7 + $0x8] sm:$0xff]
    %v170 = vld [vmem:[%s7 + $0x10] sm:$0xff]
    %v171 = vld [vmem:[%s7 + $0x18] sm:$0xff]
    %v172 = vld [vmem:[%s7 + $0x20] sm:$0xff]
    %v173 = vld [vmem:[%s7 + $0x28] sm:$0xff]
    %v174 = vld [vmem:[%s7 + $0x30] sm:$0xff]
    %v175 = vld [vmem:[%s7 + $0x38] sm:$0xff]
    %v176 = vld [vmem:[%s7 + $0x40] sm:$0xff]
    %v177 = vld [vmem:[%s7 + $0x48] sm:$0xff]
    %v178 = vld [vmem:[%s8] sm:$0x1]
    %v180 = vperm.slane %v178, 0
    %182 = vmatpush.msra.mxu0 0.0
    %183 = vmatpush.msra.mxu0 0.0
    %184 = vmatpush.msra.mxu0 0.0
    %185 = vmatpush.msra.mxu0 0.0
    %186 = vmatpush.msra.mxu0 0.0
    %187 = vmatpush.msra.mxu0 0.0
    %188 = vmatpush.msra.mxu0 %v177
    %189 = vmatpush.msra.mxu0 %v176
    %190 = vmatpush.msra.mxu0 %v175
    %191 = vmatpush.msra.mxu0 %v174
    %192 = vmatpush.msra.mxu0 %v173
    %193 = vmatpush.msra.mxu0 %v172
    %194 = vmatpush.msra.mxu0 %v171
    %195 = vmatpush.msra.mxu0 %v170
    %196 = vmatpush.msra.mxu0 %v169
    %197 = vmatpush.msra.mxu0 %v168
    %198 = vmatmul.f32.gmra.mxu0 %v67
    %v199 = vpop.f32.mrf.mxu0
    %v200 = vadd.f32 %v180, %v199
    %201 = vdwg.mxu0
    %v202 = vld [vmem:[%s9] sm:$0xff]
    %v203 = vld [vmem:[%s9 + $0x8] sm:$0xff]
    %v204 = vld [vmem:[%s10] sm:$0x1]
    %v206 = vperm.slane %v204, 0
    %v209 = vsel %vm95, %v200, 0
    %211 = vmatpush.msra.mxu0 0.0
    %212 = vmatpush.msra.mxu0 0.0
    %213 = vmatpush.msra.mxu0 0.0
    %214 = vmatpush.msra.mxu0 0.0
    %215 = vmatpush.msra.mxu0 0.0
    %216 = vmatpush.msra.mxu0 0.0
    %217 = vmatpush.msra.mxu0 0.0
    %218 = vmatpush.msra.mxu0 0.0
    %219 = vmatpush.msra.mxu0 0.0
    %220 = vmatpush.msra.mxu0 0.0
    %221 = vmatpush.msra.mxu0 0.0
    %222 = vmatpush.msra.mxu0 0.0
    %223 = vmatpush.msra.mxu0 0.0
    %224 = vmatpush.msra.mxu0 0.0
    %225 = vmatpush.msra.mxu0 %v203
    %226 = vmatpush.msra.mxu0 %v202
    %227 = vmatmul.f32.gmra.mxu0 %v209
    %v228 = vpop.f32.mrf.mxu0
    %v229 = vadd.f32 %v206, %v228
    %230 = vdwg.mxu0
    %v231 = vld [vmem:[%s11] sm:$0x1]
    %v233 = vperm.slane %v231, 0
    %v235 = vmul.f32 %v229, %v233
    %v236 = vsel %vm95, %v235, 0.0
    %237 = vadd.xlane.f32.xlu0 %v236
    %v238 = vpop.xlane.xlu0 %237
    %v239 = vld [vmem:[#allocation2] sm:$0x1]
    %v241 = vperm.slane %v239, 0
    %v243 = vadd.f32 %v238, %v241
    %v244 = vsub.f32 0.0, %v243
    %v245 = vmul.f32 %v244, 1.442695
    %v246 = vpow.pop %v245
    %v247 = vadd.f32 %v246, 1.0
    %v248 = vrcp.pop %v247
    %v249 = vmul.f32 %v247, %v248
    %v250 = vsub.f32 1.0, %v249
    %v251 = vmul.f32 %v248, %v250
    %v252 = vadd.f32 %v248, %v251
    %vm253 = vweird.f32 %v247
    %vm254 = vweird.f32 %v248
    %vm255 = vmor %vm253, %vm254
    %v256 = vsel %vm255, %v248, %v252
    %v257 = vand.u32 2147483647, %v247
    %vm258 = vcmp.eq.f32.partialorder %v257, 8.507059e+37
    %v259 = vand.u32 %v247, 2147483648
    %v260 = vor.u32 1.1754944e-38, %v259
    %v261 = vsel %vm258, %v260, %v256
    %v262 = vmul.f32 1.0, %v261
    %vm263 = vcmask 7168
    %264 = vst.msk [vmem:[%s14] sm:$0xff] %vm263, %v262
    %v265 = vld [vmem:[%s7] sm:$0xff]
    %v266 = vld [vmem:[%s7 + $0x8] sm:$0xff]
    %v267 = vld [vmem:[%s7 + $0x10] sm:$0xff]
    %v268 = vld [vmem:[%s7 + $0x18] sm:$0xff]
    %v269 = vld [vmem:[%s7 + $0x20] sm:$0xff]
    %v270 = vld [vmem:[%s7 + $0x28] sm:$0xff]
    %v271 = vld [vmem:[%s7 + $0x30] sm:$0xff]
    %v272 = vld [vmem:[%s7 + $0x38] sm:$0xff]
    %v273 = vld [vmem:[%s7 + $0x40] sm:$0xff]
    %v274 = vld [vmem:[%s7 + $0x48] sm:$0xff]
    %v275 = vld [vmem:[%s8] sm:$0x1]
    %v277 = vperm.slane %v275, 0
    %v280 = vsel %vm65, %v166, 0
    %282 = vmatpush.msra.mxu0 0.0
    %283 = vmatpush.msra.mxu0 0.0
    %284 = vmatpush.msra.mxu0 0.0
    %285 = vmatpush.msra.mxu0 0.0
    %286 = vmatpush.msra.mxu0 0.0
    %287 = vmatpush.msra.mxu0 0.0
    %288 = vmatpush.msra.mxu0 %v274
    %289 = vmatpush.msra.mxu0 %v273
    %290 = vmatpush.msra.mxu0 %v272
    %291 = vmatpush.msra.mxu0 %v271
    %292 = vmatpush.msra.mxu0 %v270
    %293 = vmatpush.msra.mxu0 %v269
    %294 = vmatpush.msra.mxu0 %v268
    %295 = vmatpush.msra.mxu0 %v267
    %296 = vmatpush.msra.mxu0 %v266
    %297 = vmatpush.msra.mxu0 %v265
    %298 = vmatmul.f32.gmra.mxu0 %v280
    %v299 = vpop.f32.mrf.mxu0
    %v300 = vadd.f32 %v277, %v299
    %301 = vdwg.mxu0
    %v302 = vld [vmem:[%s9] sm:$0xff]
    %v303 = vld [vmem:[%s9 + $0x8] sm:$0xff]
    %v304 = vld [vmem:[%s10] sm:$0x1]
    %v306 = vperm.slane %v304, 0
    %v309 = vsel %vm95, %v300, 0
    %311 = vmatpush.msra.mxu0 0.0
    %312 = vmatpush.msra.mxu0 0.0
    %313 = vmatpush.msra.mxu0 0.0
    %314 = vmatpush.msra.mxu0 0.0
    %315 = vmatpush.msra.mxu0 0.0
    %316 = vmatpush.msra.mxu0 0.0
    %317 = vmatpush.msra.mxu0 0.0
    %318 = vmatpush.msra.mxu0 0.0
    %319 = vmatpush.msra.mxu0 0.0
    %320 = vmatpush.msra.mxu0 0.0
    %321 = vmatpush.msra.mxu0 0.0
    %322 = vmatpush.msra.mxu0 0.0
    %323 = vmatpush.msra.mxu0 0.0
    %324 = vmatpush.msra.mxu0 0.0
    %325 = vmatpush.msra.mxu0 %v303
    %326 = vmatpush.msra.mxu0 %v302
    %327 = vmatmul.f32.gmra.mxu0 %v309
    %v328 = vpop.f32.mrf.mxu0
    %v329 = vadd.f32 %v306, %v328
    %330 = vdwg.mxu0
    %v331 = vld [vmem:[%s11] sm:$0x1]
    %v333 = vperm.slane %v331, 0
    %v335 = vmul.f32 %v329, %v333
    %v336 = vsel %vm95, %v335, 0.0
    %337 = vadd.xlane.f32.xlu0 %v336
    %v338 = vpop.xlane.xlu0 %337
    %v339 = vld [vmem:[#allocation2] sm:$0x1]
    %v341 = vperm.slane %v339, 0
    %v343 = vadd.f32 %v338, %v341
    %v344 = vsub.f32 0.0, %v343
    %v345 = vmul.f32 %v344, 1.442695
    %v346 = vpow.pop %v345
    %v347 = vadd.f32 %v346, 1.0
    %v348 = vrcp.pop %v347
    %v349 = vmul.f32 %v347, %v348
    %v350 = vsub.f32 1.0, %v349
    %v351 = vmul.f32 %v348, %v350
    %v352 = vadd.f32 %v348, %v351
    %vm353 = vweird.f32 %v347
    %vm354 = vweird.f32 %v348
    %vm355 = vmor %vm353, %vm354
    %v356 = vsel %vm355, %v348, %v352
    %v357 = vand.u32 2147483647, %v347
    %vm358 = vcmp.eq.f32.partialorder %v357, 8.507059e+37
    %v359 = vand.u32 %v347, 2147483648
    %v360 = vor.u32 1.1754944e-38, %v359
    %v361 = vsel %vm358, %v360, %v356
    %v362 = vmul.f32 1.0, %v361
    %363 = vst.msk [vmem:[%s15] sm:$0xff] %vm263, %v362
    // Predicated region
    $region54: #{tpu_custom_call.1} parent=1 // pred_check
      _
    $region55: #{tpu_custom_call.1} parent=1 // pred_check_branch
      %365 = sbr.rel (0) target = $region57
    $region56: #{tpu_custom_call.1} parent=1 // pred_region
      %367 = vsyncadd [#allocation4], 0
      %s369 = sshll.u32 [#allocation3], 4
      %s370 = int_to_ptr.vmem [resolvable:$true] %s369
      %s371 = sshll.u32 %s13, 4
      %s372 = int_to_ptr.hbm [resolvable:$true] %s371
      %374 = dma.vmem_to_hbm [thread:$0]  %s370, 128, %s372, [#allocation4]
    $region57: #{tpu_custom_call.1} parent=1 // pred_fallthru
      _
    // Predicated region
    $region58: #{tpu_custom_call.1} parent=1 // pred_check
      _
    $region59: #{tpu_custom_call.1} parent=1 // pred_check_branch
      %376 = sbr.rel (0) target = $region61
    $region60: #{tpu_custom_call.1} parent=1 // pred_region
      _
    $region61: #{tpu_custom_call.1} parent=1 // pred_fallthru
      _
    // Predicated region
    $region62: #{tpu_custom_call.1} parent=1 // pred_check
      _
    $region63: #{tpu_custom_call.1} parent=1 // pred_check_branch
      %378 = sbr.rel (0) target = $region65
    $region64: #{tpu_custom_call.1} parent=1 // pred_region
      _
    $region65: #{tpu_custom_call.1} parent=1 // pred_fallthru
      _
    // Predicated region
    $region66: #{tpu_custom_call.1} parent=1 // pred_check
      _
    $region67: #{tpu_custom_call.1} parent=1 // pred_check_branch
      %380 = sbr.rel (0) target = $region69
    $region68: #{tpu_custom_call.1} parent=1 // pred_region
      %382 = dma.done [#allocation4], 128
    $region69: #{tpu_custom_call.1} parent=1 // pred_fallthru
      _
    // Predicated region
    $region70: #{tpu_custom_call.1} parent=1 // pred_check
      _
    $region71: #{tpu_custom_call.1} parent=1 // pred_check_branch
      %384 = sbr.rel (0) target = $region73
    $region72: #{tpu_custom_call.1} parent=1 // pred_region
      _
    $region73: #{tpu_custom_call.1} parent=1 // pred_fallthru
      _
    // Predicated region
    $region74: #{tpu_custom_call.1} parent=1 // pred_check
      _
    $region75: #{tpu_custom_call.1} parent=1 // pred_check_branch
      %386 = sbr.rel (0) target = $region77
    $region76: #{tpu_custom_call.1} parent=1 // pred_region
      _
    $region77: #{tpu_custom_call.1} parent=1 // pred_fallthru
      _
    %387 = vsyncpa [#allocation4], 1

</llo_original>
